<compile_context>
chip_gen: v7x
topology: tpu7x:2x2x1
jax: 0.10.0
libtpu: 0.0.40
codegen_flags: <defaults>
</compile_context>

<pallas_src>
import math
import jax
import jax.numpy as jnp
from jax.experimental import pallas as pl
from jax.experimental.pallas import tpu as pltpu


def _round_up(x: int, m: int) -> int:
    return ((x + m - 1) // m) * m


def _aligned_divisor_tile(dim_padded: int, align: int, cap: int) -> int:
    """Largest t <= cap that is a multiple of `align` and divides dim_padded."""
    cap = min(cap, dim_padded)
    q = dim_padded // align
    best = align
    d = 1
    while d * align <= cap:
        if q % d == 0:
            best = d * align
        d += 1
    return best


# ---------------------------------------------------------------------------
# Kernels
# ---------------------------------------------------------------------------

def _mm_bias_kernel(x_ref, w_ref, b_ref, o_ref):
    """Single-K-step: full reduction in one MXU pass, bias fused in."""
    o_ref[...] = (
        jnp.dot(x_ref[...], w_ref[...], preferred_element_type=jnp.float32)
        + b_ref[...]
    ).astype(o_ref.dtype)


def _mm_kernel(x_ref, w_ref, o_ref):
    """Single-K-step, no bias."""
    o_ref[...] = jnp.dot(
        x_ref[...], w_ref[...], preferred_element_type=jnp.float32
    ).astype(o_ref.dtype)


def _mm_bias_kacc_kernel(x_ref, w_ref, b_ref, o_ref):
    """K-tiled fallback: accumulate directly into the resident f32 output block."""
    kk = pl.program_id(2)
    part = jnp.dot(x_ref[...], w_ref[...], preferred_element_type=jnp.float32)

    @pl.when(kk == 0)
    def _():
        o_ref[...] = part

    @pl.when(kk > 0)
    def _():
        o_ref[...] += part

    @pl.when(kk == pl.num_programs(2) - 1)
    def _():
        o_ref[...] += b_ref[...]


def _mm_kacc_kernel(x_ref, w_ref, o_ref):
    """K-tiled fallback, no bias."""
    kk = pl.program_id(2)
    part = jnp.dot(x_ref[...], w_ref[...], preferred_element_type=jnp.float32)

    @pl.when(kk == 0)
    def _():
        o_ref[...] = part

    @pl.when(kk > 0)
    def _():
        o_ref[...] += part


# ---------------------------------------------------------------------------
# Wrapper
# ---------------------------------------------------------------------------

def decoder_forward(x, weight, bias=None, *, tile_cap=512,
                    vmem_budget_bytes=32 * 1024 * 1024):
    """out = x @ weight (+ bias), tiled Pallas TPU kernel."""
    m, k = x.shape
    kw, n = weight.shape
    assert k == kw, f"inner dims mismatch: {k} vs {kw}"
    dtype = x.dtype
    has_bias = bias is not None

    # Alignment-only padding targets.
    mp = _round_up(m, 8)      # sublane alignment
    np_ = _round_up(n, 128)   # lane alignment (lane-dense stores)

    # N tile: largest 128-multiple divisor of np_ within the cap.
    tn = _aligned_divisor_tile(np_, 128, tile_cap)

    # M tile candidates: x-resident (tm = mp) first so W streams from HBM once,
    # then shrinking aligned divisors of mp.
    tm_candidates = []
    if mp <= 4096:
        tm_candidates.append(mp)
    for cap in (tile_cap, 256, 128, 64, 32, 16, 8):
        t = _aligned_divisor_tile(mp, 8, cap)
        if t not in tm_candidates:
            tm_candidates.append(t)

    def footprint(tm_, tk_, tn_):
        # double-buffered input panels + double-buffered output tile (+ bias)
        b = 2 * 4 * (tm_ * tk_ + tk_ * tn_) + 2 * 4 * (tm_ * tn_)
        if has_bias:
            b += 2 * 4 * tn_
        return b

    # Prefer collapsing the K axis (single step, unpadded K via the
    # "block equals full array dim" exemption).
    tm = None
    tk = None
    kp = k
    single_k = False
    for cand in tm_candidates:
        if footprint(cand, k, tn) <= vmem_budget_bytes:
            tm, tk, kp, single_k = cand, k, k, True
            break

    if tm is None:
        # Fallback: tile K (padded to 128) and accumulate across a K grid axis.
        kp = _round_up(k, 128)
        for tk_cap in (tile_cap, 256, 128):
            tk_try = _aligned_divisor_tile(kp, 128, tk_cap)
            for cand in tm_candidates:
                if footprint(cand, tk_try, tn) <= vmem_budget_bytes:
                    tm, tk = cand, tk_try
                    break
            if tm is not None:
                break
        if tm is None:  # last resort: smallest tiles
            tm = _aligned_divisor_tile(mp, 8, 8)
            tk = _aligned_divisor_tile(kp, 128, 128)

    # Megacore (v7x): make sure at least one parallel axis has >= 2 blocks
    # when the problem allows it (prefer splitting N).
    if mp // tm == 1 and np_ // tn == 1 and np_ // 128 >= 2:
        tn = _aligned_divisor_tile(np_, 128, max(128, tn // 2))

    grid_i, grid_j = mp // tm, np_ // tn

    # Alignment-only zero padding (padded K contributes zeros to the sum).
    x_p = x if (mp == m and kp == k) else jnp.pad(x, ((0, mp - m), (0, kp - k)))
    w_p = (weight if (kp == k and np_ == n)
           else jnp.pad(weight, ((0, kp - k), (0, np_ - n))))
    inputs = [x_p, w_p]
    if has_bias:
        b2 = jnp.asarray(bias).reshape(1, n).astype(jnp.float32)
        b_p = b2 if np_ == n else jnp.pad(b2, ((0, 0), (0, np_ - n)))
        inputs.append(b_p)

    if single_k:
        grid = (grid_i, grid_j)
        dims = ("parallel", "parallel")
        x_spec = pl.BlockSpec((tm, k), lambda i, j: (i, 0))
        w_spec = pl.BlockSpec((k, tn), lambda i, j: (0, j))
        b_spec = pl.BlockSpec((1, tn), lambda i, j: (0, j))
        out_spec = pl.BlockSpec((tm, tn), lambda i, j: (i, j))
        kernel = _mm_bias_kernel if has_bias else _mm_kernel
    else:
        grid = (grid_i, grid_j, kp // tk)
        dims = ("parallel", "parallel", "arbitrary")
        x_spec = pl.BlockSpec((tm, tk), lambda i, j, kk: (i, kk))
        w_spec = pl.BlockSpec((tk, tn), lambda i, j, kk: (kk, j))
        b_spec = pl.BlockSpec((1, tn), lambda i, j, kk: (0, j))
        out_spec = pl.BlockSpec((tm, tn), lambda i, j, kk: (i, j))
        kernel = _mm_bias_kacc_kernel if has_bias else _mm_kacc_kernel

    in_specs = [x_spec, w_spec] + ([b_spec] if has_bias else [])

    cost = pl.CostEstimate(
        flops=2 * m * k * n,
        transcendentals=0,
        bytes_accessed=4 * (grid_j * mp * kp + grid_i * kp * np_
                            + mp * np_ + (np_ if has_bias else 0)),
    )

    out_p = pl.pallas_call(
        kernel,
        out_shape=jax.ShapeDtypeStruct((mp, np_), jnp.float32),
        grid=grid,
        in_specs=in_specs,
        out_specs=out_spec,
        compiler_params=pltpu.CompilerParams(
            dimension_semantics=dims,
            vmem_limit_bytes=64 * 1024 * 1024,
        ),
        cost_estimate=cost,
    )(*inputs)

    out = out_p[:m, :n]
    if out.dtype != dtype:
        out = out.astype(dtype)
    return out


def init_decoder_params(key, input_size, output_size, bias=True):
    """Matches Decoder.reset_parameters: uniform(-stdv, stdv), stdv = 1/sqrt(output_size)."""
    stdv = 1.0 / math.sqrt(output_size)
    k_w, k_b = jax.random.split(key)
    weight = jax.random.uniform(
        k_w, (input_size, output_size), jnp.float32, minval=-stdv, maxval=stdv
    )
    if bias:
        b = jax.random.uniform(
            k_b, (output_size,), jnp.float32, minval=-stdv, maxval=stdv
        )
    else:
        b = None
    return weight, b


if __name__ == "__main__":
    key = jax.random.PRNGKey(0)

    # Small demo shape consistent with the module (N x input_size -> N x output_size).
    batch, input_size, output_size = 8, 32, 64
    k_x, k_p, k_x2, k_p2 = jax.random.split(key, 4)

    x = jax.random.normal(k_x, (batch, input_size), jnp.float32)
    weight, bias = init_decoder_params(k_p, input_size, output_size, bias=True)

    out = jax.block_until_ready(decoder_forward(x, weight, bias))
    ref = x @ weight + bias
    assert out.shape == (batch, output_size)
    assert jnp.allclose(out, ref, atol=1e-5, rtol=1e-5)

    # Larger, non-multiple (ragged) shapes: exercises alignment-only padding
    # (M=300->304, N=520->640), x-resident tm, single-pass W streaming.
    b2, in2, out2 = 300, 384, 520
    x2 = jax.random.normal(k_x2, (b2, in2), jnp.float32)
    w2, bias2 = init_decoder_params(k_p2, in2, out2, bias=True)
    out_big = jax.block_until_ready(decoder_forward(x2, w2, bias2))
    ref_big = x2 @ w2 + bias2
    assert out_big.shape == (b2, out2)
    assert jnp.allclose(out_big, ref_big, atol=1e-4, rtol=1e-4)

    # bias=None path (register_parameter('bias', None) case) -> no-bias kernel.
    out_nb = jax.block_until_ready(decoder_forward(x, weight, None))
    assert jnp.allclose(out_nb, x @ weight, atol=1e-5, rtol=1e-5)

    # Force the K-tiled accumulate fallback by shrinking the VMEM budget.
    out_kacc = jax.block_until_ready(
        decoder_forward(x2, w2, bias2, vmem_budget_bytes=1 * 1024 * 1024)
    )
    assert jnp.allclose(out_kacc, ref_big, atol=1e-4, rtol=1e-4)

    print("KERNEL_OK")
</pallas_src>

<mosaic_0001>
module attributes {stable_mosaic.version = 11 : i64} {
  func.func @_mm_bias_kernel(%arg0: i32, %arg1: i32, %arg2: memref<8x32xf32, #tpu.memory_space<vmem>>, %arg3: memref<32x128xf32, #tpu.memory_space<vmem>>, %arg4: memref<1x128xf32, #tpu.memory_space<vmem>>, %arg5: memref<8x128xf32, #tpu.memory_space<vmem>>) attributes {dimension_semantics = [#tpu.dimension_semantics<parallel>, #tpu.dimension_semantics<parallel>], iteration_bounds = array<i64: 1, 1>, scalar_prefetch = 0 : i64, scratch_operands = 0 : i64, tpu.core_type = #tpu.core_type<tc>, window_params = [{transform_indices = @transform_0, window_bounds = array<i64: 8, 32>}, {transform_indices = @transform_1, window_bounds = array<i64: 32, 128>}, {transform_indices = @transform_2, window_bounds = array<i64: 1, 128>}, {transform_indices = @transform_3, window_bounds = array<i64: 8, 128>}]} {
    %c0 = arith.constant 0 : index
    %c0_0 = arith.constant 0 : index
    %0 = vector.load %arg2[%c0, %c0_0] : memref<8x32xf32, #tpu.memory_space<vmem>>, vector<8x32xf32>
    %c0_1 = arith.constant 0 : index
    %c0_2 = arith.constant 0 : index
    %1 = vector.load %arg3[%c0_1, %c0_2] : memref<32x128xf32, #tpu.memory_space<vmem>>, vector<32x128xf32>
    %cst = arith.constant dense<0.000000e+00> : vector<8x128xf32>
    %2 = tpu.matmul %0, %1, %cst {dimension_numbers = #tpu.dot_dimension_numbers<[1], [0], [0], [1], [0, 0, 1, 1], [], []>} : vector<8x32xf32>, vector<32x128xf32>, vector<8x128xf32> -> vector<8x128xf32>
    %c0_3 = arith.constant 0 : index
    %c0_4 = arith.constant 0 : index
    %3 = vector.load %arg4[%c0_3, %c0_4] : memref<1x128xf32, #tpu.memory_space<vmem>>, vector<1x128xf32>
    %4 = vector.broadcast %3 : vector<1x128xf32> to vector<8x128xf32>
    %5 = arith.addf %2, %4 : vector<8x128xf32>
    %c0_5 = arith.constant 0 : index
    %c0_6 = arith.constant 0 : index
    %6 = vector.load %arg5[%c0_5, %c0_6] : memref<8x128xf32, #tpu.memory_space<vmem>>, vector<8x128xf32>
    tpu.vector_store %arg5[%c0_5, %c0_6], %5 {strides = array<i32>} : memref<8x128xf32, #tpu.memory_space<vmem>>, vector<8x128xf32>,
    return
  }
  func.func @transform_0(%arg0: i32, %arg1: i32) -> (i32, i32) {
    %c0_i32 = arith.constant 0 : i32
    %c0_i32_0 = arith.constant 0 : i32
    return %arg0, %c0_i32 : i32, i32
  }
  func.func @transform_1(%arg0: i32, %arg1: i32) -> (i32, i32) {
    %c0_i32 = arith.constant 0 : i32
    %c0_i32_0 = arith.constant 0 : i32
    return %c0_i32, %arg1 : i32, i32
  }
  func.func @transform_2(%arg0: i32, %arg1: i32) -> (i32, i32) {
    %c0_i32 = arith.constant 0 : i32
    %c0_i32_0 = arith.constant 0 : i32
    return %c0_i32, %arg1 : i32, i32
  }
  func.func @transform_3(%arg0: i32, %arg1: i32) -> (i32, i32) {
    %c0_i32 = arith.constant 0 : i32
    return %arg0, %arg1 : i32, i32
  }
}

</mosaic_0001>

<llo_original>
// kernel: tpu_custom_call.1
$region0: #{tpu_custom_call.1}
  #allocation0 [shape = 'u32[]', space=smem, size = 0x4, offset = 0x4, fixed_abs, tag = 'smem constant byte address 0x4 - core index']
  #allocation1 [shape = 'u32[144,128]{1,0:T(1,128)}', space=vmem, size = 0x12000, scoped, tag = 'internal scratch']
  %s0 = inlined_call_operand.hbm [shape: f32[8,32], index: 0, kind: input, shape index: {}]
  %s1 = inlined_call_operand.hbm [shape: f32[32,128], index: 1, kind: input, shape index: {}]
  %s2 = inlined_call_operand.hbm [shape: f32[1,128], index: 2, kind: input, shape index: {}]
  %s3 = inlined_call_operand.hbm [shape: f32[8,128], index: 3, kind: output, shape index: {}]
  %s4 = sld [smem:[#allocation0]]
  $region34: #{tpu_custom_call.1} parent=0
    _
  %s6 = ssub.s32 1, %s4
  %s7 = scalar_select 0, %s6, %s4
  $region1: #{tpu_custom_call.1} parent=0
    #allocation2 [shape = 'u8[4096]{0}', space=vmem, size = 0x1000, scoped, tag = 'input window, operand 0, single buffered']
    #allocation3 [shape = 's32[1]{0}', space=sflag, size = 0x4, scoped, tag = 'scoped memory for tpu_custom_call.1']
    #allocation4 [shape = 's32[1]{0}', space=sflag, size = 0x4, scoped, tag = 'scoped memory for tpu_custom_call.1']
    #allocation5 [shape = 'u8[16384]{0}', space=vmem, size = 0x4000, scoped, tag = 'input window, operand 1, single buffered']
    #allocation6 [shape = 's32[1]{0}', space=sflag, size = 0x4, scoped, tag = 'scoped memory for tpu_custom_call.1']
    #allocation7 [shape = 'u8[512]{0}', space=vmem, size = 0x400, scoped, tag = 'input window, operand 2, single buffered']
    #allocation8 [shape = 'u8[4096]{0}', space=vmem, size = 0x1000, scoped, tag = 'output window, operand 0, single buffered']
    %8 = vsyncpa [#allocation3], 0
    %9 = vsyncpa [#allocation6], 0
    %10 = vsyncpa [#allocation4], 0
    // Predicated region
    $region2: #{tpu_custom_call.1} parent=1 // pred_check
      _
    $region3: #{tpu_custom_call.1} parent=1 // pred_check_branch
      %12 = sbr.rel (0) target = $region5
    $region4: #{tpu_custom_call.1} parent=1 // pred_region
      %s14 = ssub.s32 128, 128
      %15 = vsyncadd [#allocation3], %s14
      %s17 = sshll.u32 [#allocation2], 4
      %s18 = int_to_ptr.vmem [resolvable:$true] %s17
      %20 = dma.hbm_to_vmem [thread:$0]  %s0, 128, %s18, [#allocation3]
    $region5: #{tpu_custom_call.1} parent=1 // pred_fallthru
      _
    // Predicated region
    $region6: #{tpu_custom_call.1} parent=1 // pred_check
      _
    $region7: #{tpu_custom_call.1} parent=1 // pred_check_branch
      %22 = sbr.rel (0) target = $region9
    $region8: #{tpu_custom_call.1} parent=1 // pred_region
      %s24 = ssub.s32 512, 512
      %25 = vsyncadd [#allocation6], %s24
      %s26 = sshll.u32 [#allocation5], 4
      %s27 = int_to_ptr.vmem [resolvable:$true] %s26
      %32 = dma.hbm_to_vmem [thread:$0]  %s1, 512, %s27, [#allocation6], 128, 128, 8
    $region9: #{tpu_custom_call.1} parent=1 // pred_fallthru
      _
    // Predicated region
    $region10: #{tpu_custom_call.1} parent=1 // pred_check
      _
    $region11: #{tpu_custom_call.1} parent=1 // pred_check_branch
      %34 = sbr.rel (0) target = $region13
    $region12: #{tpu_custom_call.1} parent=1 // pred_region
      %s36 = ssub.s32 16, 16
      %37 = vsyncadd [#allocation6], %s36
      %s39 = sshll.u32 [#allocation7], 4
      %s40 = int_to_ptr.vmem [resolvable:$true] %s39
      %42 = dma.hbm_to_vmem [thread:$0]  %s2, 16, %s40, [#allocation6]
    $region13: #{tpu_custom_call.1} parent=1 // pred_fallthru
      _
    // Predicated region
    $region14: #{tpu_custom_call.1} parent=1 // pred_check
      _
    $region15: #{tpu_custom_call.1} parent=1 // pred_check_branch
      %44 = sbr.rel (0) target = $region17
    $region16: #{tpu_custom_call.1} parent=1 // pred_region
      %45 = dma.done [#allocation3], 128
    $region17: #{tpu_custom_call.1} parent=1 // pred_fallthru
      _
    // Predicated region
    $region18: #{tpu_custom_call.1} parent=1 // pred_check
      _
    $region19: #{tpu_custom_call.1} parent=1 // pred_check_branch
      %47 = sbr.rel (0) target = $region21
    $region20: #{tpu_custom_call.1} parent=1 // pred_region
      %48 = dma.done [#allocation6], 512
    $region21: #{tpu_custom_call.1} parent=1 // pred_fallthru
      _
    // Predicated region
    $region22: #{tpu_custom_call.1} parent=1 // pred_check
      _
    $region23: #{tpu_custom_call.1} parent=1 // pred_check_branch
      %50 = sbr.rel (0) target = $region25
    $region24: #{tpu_custom_call.1} parent=1 // pred_region
      %51 = dma.done [#allocation6], 16
    $region25: #{tpu_custom_call.1} parent=1 // pred_fallthru
      _
    %v52 = vld [vmem:[#allocation2] sm:$0xff]
    %v53 = vld [vmem:[#allocation5] sm:$0xff]
    %v54 = vld [vmem:[#allocation5 + $0x8] sm:$0xff]
    %v55 = vld [vmem:[#allocation5 + $0x10] sm:$0xff]
    %v56 = vld [vmem:[#allocation5 + $0x18] sm:$0xff]
    %v57 = vld [vmem:[#allocation7] sm:$0x1]
    %v59 = vlaneseq
    %v60 = vshrl.u32 %v59, 7
    %v61 = vsub.s32 0, %v60
    %v62 = vrot.slane %v57, %v61
    %vm64 = vcmask 261120
    %v66 = vsel %vm64, %v52, 0
    %68 = vmatprep.subr.mxu0 0.0
    %69 = vmatpush1.msra.mxu0 %v53
    %70 = vmatprep.subr.mxu0 0.0
    %71 = vmatpush1.msra.mxu0 %v54
    %72 = vmatprep.subr.mxu0 0.0
    %73 = vmatpush1.msra.mxu0 %v55
    %74 = vmatprep.subr.mxu0 0.0
    %75 = vmatpush1.msra.mxu0 %v56
    %76 = vmatprep.subr.mxu0 0.0
    %77 = vmatpush1.msra.mxu0 0.0
    %78 = vmatprep.subr.mxu0 0.0
    %79 = vmatpush1.msra.mxu0 0.0
    %80 = vmatprep.subr.mxu0 0.0
    %81 = vmatpush1.msra.mxu0 0.0
    %82 = vmatprep.subr.mxu0 0.0
    %83 = vmatpush1.msra.mxu0 0.0
    %84 = vmatprep.subr.mxu0 0.0
    %85 = vmatpush1.msra.mxu0 0.0
    %86 = vmatprep.subr.mxu0 0.0
    %87 = vmatpush1.msra.mxu0 0.0
    %88 = vmatprep.subr.mxu0 0.0
    %89 = vmatpush1.msra.mxu0 0.0
    %90 = vmatprep.subr.mxu0 0.0
    %91 = vmatpush1.msra.mxu0 0.0
    %92 = vmatprep.subr.mxu0 0.0
    %93 = vmatpush1.msra.mxu0 0.0
    %94 = vmatprep.subr.mxu0 0.0
    %95 = vmatpush1.msra.mxu0 0.0
    %96 = vmatprep.subr.mxu0 0.0
    %97 = vmatpush1.msra.mxu0 0.0
    %98 = vmatprep.subr.mxu0 0.0
    %99 = vmatpush1.msra.mxu0 0.0
    %100 = vmatprep.subr.mxu0 0.0
    %101 = vmatpush1.msra.mxu0 0.0
    %102 = vmatprep.subr.mxu0 0.0
    %103 = vmatpush1.msra.mxu0 0.0
    %104 = vmatprep.subr.mxu0 0.0
    %105 = vmatpush1.msra.mxu0 0.0
    %106 = vmatprep.subr.mxu0 0.0
    %107 = vmatpush1.msra.mxu0 0.0
    %108 = vmatprep.subr.mxu0 0.0
    %109 = vmatpush1.msra.mxu0 0.0
    %110 = vmatprep.subr.mxu0 0.0
    %111 = vmatpush1.msra.mxu0 0.0
    %112 = vmatprep.subr.mxu0 0.0
    %113 = vmatpush1.msra.mxu0 0.0
    %114 = vmatprep.subr.mxu0 0.0
    %115 = vmatpush1.msra.mxu0 0.0
    %116 = vmatprep.subr.mxu0 0.0
    %117 = vmatpush1.msra.mxu0 0.0
    %118 = vmatprep.subr.mxu0 0.0
    %119 = vmatpush1.msra.mxu0 0.0
    %120 = vmatprep.subr.mxu0 0.0
    %121 = vmatpush1.msra.mxu0 0.0
    %122 = vmatprep.subr.mxu0 0.0
    %123 = vmatpush1.msra.mxu0 0.0
    %124 = vmatprep.subr.mxu0 0.0
    %125 = vmatpush1.msra.mxu0 0.0
    %126 = vmatprep.subr.mxu0 0.0
    %127 = vmatpush1.msra.mxu0 0.0
    %128 = vmatprep.subr.mxu0 0.0
    %129 = vmatpush1.msra.mxu0 0.0
    %130 = vmatprep.subr.mxu0 0.0
    %131 = vmatpush1.msra.mxu0 0.0
    %132 = vmatprep.mubr.f32.mxu0 0.0
    %133 = vmatmul.mubr.f32.gmra.mrb[0].mxu0 %v66
    %v134 = vpop.f32.mrb[0].mxu0
    %v135 = vadd.f32 %v62, %v134
    %v136 = vpop.f32.mrb[0].mxu0
    %137 = vdwg.mxu0
    %138 = vst [vmem:[#allocation8] sm:$0xff] %v135
    // Predicated region
    $region26: #{tpu_custom_call.1} parent=1 // pred_check
      _
    $region27: #{tpu_custom_call.1} parent=1 // pred_check_branch
      %140 = sbr.rel (0) target = $region29
    $region28: #{tpu_custom_call.1} parent=1 // pred_region
      %s142 = ssub.s32 128, 128
      %143 = vsyncadd [#allocation4], %s142
      %s145 = sshll.u32 [#allocation8], 4
      %s146 = int_to_ptr.vmem [resolvable:$true] %s145
      %148 = dma.vmem_to_hbm [thread:$0]  %s146, 128, %s3, [#allocation4]
    $region29: #{tpu_custom_call.1} parent=1 // pred_fallthru
      _
    // Predicated region
    $region30: #{tpu_custom_call.1} parent=1 // pred_check
      _
    $region31: #{tpu_custom_call.1} parent=1 // pred_check_branch
      %150 = sbr.rel (0) target = $region33
    $region32: #{tpu_custom_call.1} parent=1 // pred_region
      %151 = dma.done [#allocation4], 128
    $region33: #{tpu_custom_call.1} parent=1 // pred_fallthru
      _
    %152 = vsyncpa [#allocation3], 1
    %153 = vsyncpa [#allocation6], 1
    %154 = vsyncpa [#allocation4], 1

</llo_original>
